<compile_context>
chip_gen: v5e
topology: v5e:2x2
jax: 0.10.0
libtpu: 0.0.40
codegen_flags: <defaults>
</compile_context>

<pallas_src>
import functools

import jax
import jax.numpy as jnp
from jax.experimental import pallas as pl
from jax.experimental.pallas import tpu as pltpu


def _postnet_kernel(x_ref, w_ref, b_ref, o_ref):
    # x_ref: (tm, C_in), w_ref: (C_in, C_out), b_ref: (1, C_out)
    acc = jnp.dot(x_ref[...], w_ref[...], preferred_element_type=jnp.float32)
    o_ref[...] = (acc + b_ref[...]).astype(o_ref.dtype)


def _round_up(x, m):
    return ((x + m - 1) // m) * m


@functools.partial(jax.jit, static_argnames=("tm",))
def postnet_forward(inputs, weight, bias, *, tm=None):
    """inputs: (B, T, C_in); weight: (C_out, C_in) [PyTorch Conv1d layout,
    kernel dim squeezed]; bias: (C_out,). Returns (B, T, C_out)."""
    B, T, C_in = inputs.shape
    C_out = weight.shape[0]
    N = B * T

    x = inputs.reshape(N, C_in)
    w_t = weight.T                                    # (C_in, C_out)
    b2 = bias.astype(jnp.float32).reshape(1, C_out)   # f32 add onto f32 acc

    # ---- token-tile choice ---------------------------------------------
    # Large tile amortizes per-step overhead; cap at 8192 (v5e scoped VMEM
    # safety: 8192x32 f32 in + 8192x40 f32 out, double-buffered ~ 4.5 MiB)
    # and keep >= 2 grid steps for big N so v7x's 2 TensorCores both work.
    if tm is None:
        if N <= 1024:
            tm = _round_up(max(N, 8), 8)              # single small block
        else:
            tm = min(8192, _round_up(pl.cdiv(N, 2), 512))
    tm = max(8, _round_up(int(tm), 8))                # sublane-aligned blocks

    grid = (pl.cdiv(N, tm),)                          # trailing block masked

    out_dtype = inputs.dtype
    bytes_accessed = (
        x.size * x.dtype.itemsize
        + w_t.size * w_t.dtype.itemsize
        + b2.size * b2.dtype.itemsize
        + N * C_out * jnp.dtype(out_dtype).itemsize
    )
    cost = pl.CostEstimate(
        flops=2 * N * C_in * C_out,
        transcendentals=0,
        bytes_accessed=bytes_accessed,
    )

    out = pl.pallas_call(
        _postnet_kernel,
        out_shape=jax.ShapeDtypeStruct((N, C_out), out_dtype),
        grid_spec=pltpu.PrefetchScalarGridSpec(
            num_scalar_prefetch=0,
            grid=grid,
            in_specs=[
                pl.BlockSpec((tm, C_in), lambda i: (i, 0)),      # token tile
                pl.BlockSpec((C_in, C_out), lambda i: (0, 0)),   # invariant weight
                pl.BlockSpec((1, C_out), lambda i: (0, 0)),      # invariant bias
            ],
            out_specs=pl.BlockSpec((tm, C_out), lambda i: (i, 0)),
        ),
        compiler_params=pltpu.CompilerParams(
            dimension_semantics=("parallel",)),
        cost_estimate=cost,
    )(x, w_t, b2)

    return out.reshape(B, T, C_out)


def init_postnet_params(key, input_size, output_size=40, n_component=None,
                        dtype=jnp.float32):
    """Deterministic synthetic parameters matching nn.Conv1d(in, out, k=1)."""
    out_channels = output_size if n_component is None else n_component * output_size
    k_w, k_b = jax.random.split(key)
    # Conv1d weight is (out_channels, in_channels, 1); squeeze kernel dim.
    bound = 1.0 / jnp.sqrt(input_size)
    weight = jax.random.uniform(k_w, (out_channels, input_size), dtype,
                                minval=-bound, maxval=bound)
    bias = jax.random.uniform(k_b, (out_channels,), dtype,
                              minval=-bound, maxval=bound)
    return weight, bias


if __name__ == "__main__":
    key = jax.random.PRNGKey(0)
    k_in, k_p = jax.random.split(key)

    B, T, input_size, output_size = 2, 8, 32, 40
    inputs = jax.random.normal(k_in, (B, T, input_size), dtype=jnp.float32)
    weight, bias = init_postnet_params(k_p, input_size, output_size)

    out = postnet_forward(inputs, weight, bias)
    out = jax.block_until_ready(out)

    # Reference check against plain-JAX equivalent of the PyTorch forward.
    ref = jnp.einsum("btc,oc->bto", inputs, weight) + bias[None, None, :]
    assert out.shape == (B, T, output_size)
    assert jnp.allclose(out, ref, atol=1e-5, rtol=1e-5)

    # Non-multiple-of-tile, larger shape: exercises the masked trailing block.
    B2, T2 = 3, 437
    inputs2 = jax.random.normal(k_in, (B2, T2, input_size), dtype=jnp.float32)
    out2 = jax.block_until_ready(postnet_forward(inputs2, weight, bias, tm=512))
    ref2 = jnp.einsum("btc,oc->bto", inputs2, weight) + bias[None, None, :]
    assert out2.shape == (B2, T2, output_size)
    assert jnp.allclose(out2, ref2, atol=1e-5, rtol=1e-5)

    # Default tm heuristic path on a larger N (grid >= 2 steps).
    B3, T3 = 4, 1000
    inputs3 = jax.random.normal(k_in, (B3, T3, input_size), dtype=jnp.float32)
    out3 = jax.block_until_ready(postnet_forward(inputs3, weight, bias))
    ref3 = jnp.einsum("btc,oc->bto", inputs3, weight) + bias[None, None, :]
    assert out3.shape == (B3, T3, output_size)
    assert jnp.allclose(out3, ref3, atol=1e-5, rtol=1e-5)

    print("KERNEL_OK")
</pallas_src>

<mosaic_0001>
module attributes {stable_mosaic.version = 11 : i64} {
  func.func @_postnet_kernel(%arg0: i32, %arg1: memref<16x32xf32, #tpu.memory_space<vmem>>, %arg2: memref<32x40xf32, #tpu.memory_space<vmem>>, %arg3: memref<1x40xf32, #tpu.memory_space<vmem>>, %arg4: memref<16x40xf32, #tpu.memory_space<vmem>>) attributes {dimension_semantics = [#tpu.dimension_semantics<parallel>], iteration_bounds = array<i64: 1>, scalar_prefetch = 0 : i64, scratch_operands = 0 : i64, tpu.core_type = #tpu.core_type<tc>, window_params = [{transform_indices = @transform_0, window_bounds = array<i64: 16, 32>}, {pipeline_mode = #tpu.pipeline_mode<synchronous>, transform_indices = @transform_1, window_bounds = array<i64: 32, 40>}, {pipeline_mode = #tpu.pipeline_mode<synchronous>, transform_indices = @transform_2, window_bounds = array<i64: 1, 40>}, {transform_indices = @transform_3, window_bounds = array<i64: 16, 40>}]} {
    %c0 = arith.constant 0 : index
    %c0_0 = arith.constant 0 : index
    %0 = vector.load %arg1[%c0, %c0_0] : memref<16x32xf32, #tpu.memory_space<vmem>>, vector<16x32xf32>
    %c0_1 = arith.constant 0 : index
    %c0_2 = arith.constant 0 : index
    %1 = vector.load %arg2[%c0_1, %c0_2] : memref<32x40xf32, #tpu.memory_space<vmem>>, vector<32x40xf32>
    %cst = arith.constant dense<0.000000e+00> : vector<16x40xf32>
    %2 = tpu.matmul %0, %1, %cst {dimension_numbers = #tpu.dot_dimension_numbers<[1], [0], [0], [1], [0, 0, 1, 1], [], []>} : vector<16x32xf32>, vector<32x40xf32>, vector<16x40xf32> -> vector<16x40xf32>
    %c0_3 = arith.constant 0 : index
    %c0_4 = arith.constant 0 : index
    %3 = vector.load %arg3[%c0_3, %c0_4] : memref<1x40xf32, #tpu.memory_space<vmem>>, vector<1x40xf32>
    %4 = vector.broadcast %3 : vector<1x40xf32> to vector<16x40xf32>
    %5 = arith.addf %2, %4 : vector<16x40xf32>
    %c0_5 = arith.constant 0 : index
    %c0_6 = arith.constant 0 : index
    %6 = vector.load %arg4[%c0_5, %c0_6] : memref<16x40xf32, #tpu.memory_space<vmem>>, vector<16x40xf32>
    tpu.vector_store %arg4[%c0_5, %c0_6], %5 {strides = array<i32>} : memref<16x40xf32, #tpu.memory_space<vmem>>, vector<16x40xf32>,
    return
  }
  func.func @transform_0(%arg0: i32) -> (i32, i32) {
    %c0_i32 = arith.constant 0 : i32
    %c0_i32_0 = arith.constant 0 : i32
    return %arg0, %c0_i32 : i32, i32
  }
  func.func @transform_1(%arg0: i32) -> (i32, i32) {
    %c0_i32 = arith.constant 0 : i32
    %c0_i32_0 = arith.constant 0 : i32
    %c0_i32_1 = arith.constant 0 : i32
    return %c0_i32, %c0_i32_0 : i32, i32
  }
  func.func @transform_2(%arg0: i32) -> (i32, i32) {
    %c0_i32 = arith.constant 0 : i32
    %c0_i32_0 = arith.constant 0 : i32
    %c0_i32_1 = arith.constant 0 : i32
    return %c0_i32, %c0_i32_0 : i32, i32
  }
  func.func @transform_3(%arg0: i32) -> (i32, i32) {
    %c0_i32 = arith.constant 0 : i32
    %c0_i32_0 = arith.constant 0 : i32
    return %arg0, %c0_i32 : i32, i32
  }
}

</mosaic_0001>

<llo_original>
// kernel: postnet_forward.1
$region0: #{postnet_forward.1}
  #allocation0 [shape = 'u32[]', space=smem, size = 0x4, offset = 0x4, fixed_abs, tag = 'smem constant byte address 0x4 - core index']
  #allocation1 [shape = 'u32[72,128]{1,0:T(1,128)}', space=vmem, size = 0x9000, scoped, tag = 'internal scratch']
  %s0 = inlined_call_operand.hbm [shape: f32[16,32], index: 0, kind: input, shape index: {}]
  %s1 = inlined_call_operand.hbm [shape: f32[32,40], index: 1, kind: input, shape index: {}]
  %s2 = inlined_call_operand.vmem [shape: f32[1,40], index: 2, kind: input, shape index: {}]
  %s3 = inlined_call_operand.hbm [shape: f32[16,40], index: 3, kind: output, shape index: {}]
  %s4 = sld [smem:[#allocation0]]
  $region30: #{postnet_forward.1} parent=0
    _
  %s6 = ssub.s32 1, %s4
  %s7 = scalar_select 0, %s6, %s4
  $region1: #{postnet_forward.1} parent=0
    #allocation2 [shape = 'u8[8192]{0}', space=vmem, size = 0x2000, scoped, tag = 'input window, operand 0, single buffered']
    #allocation3 [shape = 's32[1]{0}', space=sflag, size = 0x4, scoped, tag = 'scoped memory for postnet_forward.1']
    #allocation4 [shape = 's32[1]{0}', space=sflag, size = 0x4, scoped, tag = 'scoped memory for postnet_forward.1']
    #allocation5 [shape = 'u8[16384]{0}', space=vmem, size = 0x4000, scoped, tag = 'input window, operand 1, single buffered']
    #allocation6 [shape = 's32[1]{0}', space=sflag, size = 0x4, scoped, tag = 'scoped memory for postnet_forward.1']
    #allocation7 [shape = 'u8[8192]{0}', space=vmem, size = 0x2000, scoped, tag = 'output window, operand 0, single buffered']
    %8 = vsyncpa [#allocation3], 0
    %9 = vsyncpa [#allocation6], 0
    %10 = vsyncpa [#allocation4], 0
    // Predicated region
    $region2: #{postnet_forward.1} parent=1 // pred_check
      _
    $region3: #{postnet_forward.1} parent=1 // pred_check_branch
      %12 = sbr.rel (0) target = $region5
    $region4: #{postnet_forward.1} parent=1 // pred_region
      %14 = vsyncadd [#allocation3], 0
      %s15 = sshll.u32 %s0, 4
      %s16 = int_to_ptr.hbm [resolvable:$true] %s15
      %s17 = sshll.u32 [#allocation2], 4
      %s18 = int_to_ptr.vmem [resolvable:$true] %s17
      %23 = dma.hbm_to_vmem [thread:$0]  %s16, 256, %s18, [#allocation3], 128, 128, 8
    $region5: #{postnet_forward.1} parent=1 // pred_fallthru
      _
    // Predicated region
    $region6: #{postnet_forward.1} parent=1 // pred_check
      _
    $region7: #{postnet_forward.1} parent=1 // pred_check_branch
      %25 = sbr.rel (0) target = $region9
    $region8: #{postnet_forward.1} parent=1 // pred_region
      %27 = vsyncadd [#allocation6], 0
      %s28 = sshll.u32 %s1, 4
      %s29 = int_to_ptr.hbm [resolvable:$true] %s28
      %s30 = sshll.u32 [#allocation5], 4
      %s31 = int_to_ptr.vmem [resolvable:$true] %s30
      %36 = dma.hbm_to_vmem [thread:$0]  %s29, 512, %s31, [#allocation6], 128, 128, 8
    $region9: #{postnet_forward.1} parent=1 // pred_fallthru
      _
    // Predicated region
    $region10: #{postnet_forward.1} parent=1 // pred_check
      _
    $region11: #{postnet_forward.1} parent=1 // pred_check_branch
      %38 = sbr.rel (0) target = $region13
    $region12: #{postnet_forward.1} parent=1 // pred_region
      _
    $region13: #{postnet_forward.1} parent=1 // pred_fallthru
      _
    // Predicated region
    $region14: #{postnet_forward.1} parent=1 // pred_check
      _
    $region15: #{postnet_forward.1} parent=1 // pred_check_branch
      %40 = sbr.rel (0) target = $region17
    $region16: #{postnet_forward.1} parent=1 // pred_region
      %42 = dma.done [#allocation3], 256
    $region17: #{postnet_forward.1} parent=1 // pred_fallthru
      _
    // Predicated region
    $region18: #{postnet_forward.1} parent=1 // pred_check
      _
    $region19: #{postnet_forward.1} parent=1 // pred_check_branch
      %44 = sbr.rel (0) target = $region21
    $region20: #{postnet_forward.1} parent=1 // pred_region
      %46 = dma.done [#allocation6], 512
    $region21: #{postnet_forward.1} parent=1 // pred_fallthru
      _
    %v47 = vld [vmem:[#allocation2] sm:$0xff]
    %v48 = vld [vmem:[#allocation2 + $0x8] sm:$0xff]
    %v49 = vld [vmem:[#allocation5] sm:$0xff]
    %v50 = vld [vmem:[#allocation5 + $0x8] sm:$0xff]
    %v51 = vld [vmem:[#allocation5 + $0x10] sm:$0xff]
    %v52 = vld [vmem:[#allocation5 + $0x18] sm:$0xff]
    %v53 = vld [vmem:[%s2] sm:$0x1]
    %v55 = vperm.slane %v53, 0
    %vm57 = vcmask 261120
    %v59 = vsel %vm57, %v47, 0
    %v62 = vsel %vm57, %v48, 0
    %64 = vmatpush.msra.mxu0 0.0
    %65 = vmatpush.msra.mxu0 0.0
    %66 = vmatpush.msra.mxu0 0.0
    %67 = vmatpush.msra.mxu0 0.0
    %68 = vmatpush.msra.mxu0 0.0
    %69 = vmatpush.msra.mxu0 0.0
    %70 = vmatpush.msra.mxu0 0.0
    %71 = vmatpush.msra.mxu0 0.0
    %72 = vmatpush.msra.mxu0 0.0
    %73 = vmatpush.msra.mxu0 0.0
    %74 = vmatpush.msra.mxu0 0.0
    %75 = vmatpush.msra.mxu0 0.0
    %76 = vmatpush.msra.mxu0 %v52
    %77 = vmatpush.msra.mxu0 %v51
    %78 = vmatpush.msra.mxu0 %v50
    %79 = vmatpush.msra.mxu0 %v49
    %80 = vmatmul.f32.gmra.mxu0 %v59
    %v81 = vpop.f32.mrf.mxu0
    %v82 = vadd.f32 %v55, %v81
    %83 = vmatmul.f32.gmra.mxu0 %v62
    %v84 = vpop.f32.mrf.mxu0
    %v85 = vadd.f32 %v55, %v84
    %86 = vdwg.mxu0
    %vm87 = vcmask 326656
    %88 = vst.msk [vmem:[#allocation7] sm:$0xff] %vm87, %v82
    %89 = vst.msk [vmem:[#allocation7 + $0x8] sm:$0xff] %vm87, %v85
    // Predicated region
    $region22: #{postnet_forward.1} parent=1 // pred_check
      _
    $region23: #{postnet_forward.1} parent=1 // pred_check_branch
      %91 = sbr.rel (0) target = $region25
    $region24: #{postnet_forward.1} parent=1 // pred_region
      %93 = vsyncadd [#allocation4], 0
      %s94 = sshll.u32 [#allocation7], 4
      %s95 = int_to_ptr.vmem [resolvable:$true] %s94
      %s96 = sshll.u32 %s3, 4
      %s97 = int_to_ptr.hbm [resolvable:$true] %s96
      %102 = dma.vmem_to_hbm [thread:$0]  %s95, 256, %s97, [#allocation4], 128, 128, 8
    $region25: #{postnet_forward.1} parent=1 // pred_fallthru
      _
    // Predicated region
    $region26: #{postnet_forward.1} parent=1 // pred_check
      _
    $region27: #{postnet_forward.1} parent=1 // pred_check_branch
      %104 = sbr.rel (0) target = $region29
    $region28: #{postnet_forward.1} parent=1 // pred_region
      %106 = dma.done [#allocation4], 256
    $region29: #{postnet_forward.1} parent=1 // pred_fallthru
      _
    %107 = vsyncpa [#allocation3], 1
    %108 = vsyncpa [#allocation6], 1
    %109 = vsyncpa [#allocation4], 1

</llo_original>
